<compile_context>
chip_gen: v6e
topology: v6e:2x2x1
jax: 0.10.0
libtpu: 0.0.40
codegen_flags: <defaults>
</compile_context>

<pallas_src>
import jax
import jax.numpy as jnp
from jax.experimental import pallas as pl
from jax.experimental.pallas import tpu as pltpu


# ---------------------------------------------------------------------------
# Kernel: one (M, K) x (K, N) matmul with fused bias add.  Shapes are the
# logical (unpadded) shapes; Mosaic pads the vregs / masks the store.
# ---------------------------------------------------------------------------
def _linear_kernel(x_ref, w_ref, b_ref, o_ref):
    acc = jnp.dot(x_ref[...], w_ref[...], preferred_element_type=jnp.float32)
    o_ref[...] = (acc + b_ref[...]).astype(o_ref.dtype)


# Batch sizes up to this run gridless (whole problem resident in VMEM).
_GRIDLESS_MAX_M = 512


def linear_pallas(x, w_kn, b_1n):
    """y = x @ w_kn + b with a single Pallas TPU custom call.

    x:    (M, K) float32
    w_kn: (K, N) float32   (already transposed to (in, out) layout at init)
    b_1n: (1, N) float32   (already reshaped at init)
    """
    M, K = x.shape
    K2, N = w_kn.shape
    assert K == K2, (K, K2)
    assert b_1n.shape == (1, N), b_1n.shape

    cost = pl.CostEstimate(
        flops=2 * M * K * N,
        transcendentals=0,
        bytes_accessed=4 * (M * K + K * N + N + M * N),
    )

    if M <= _GRIDLESS_MAX_M:
        # Single invocation, no grid, no software pipeline: inputs/outputs are
        # whole arrays in VMEM, output store is one masked vst.
        return pl.pallas_call(
            _linear_kernel,
            out_shape=jax.ShapeDtypeStruct((M, N), jnp.float32),
            in_specs=[
                pl.BlockSpec(memory_space=pltpu.MemorySpace.VMEM),  # x
                pl.BlockSpec(memory_space=pltpu.MemorySpace.VMEM),  # w (K,N)
                pl.BlockSpec(memory_space=pltpu.MemorySpace.VMEM),  # b (1,N)
            ],
            out_specs=pl.BlockSpec(memory_space=pltpu.MemorySpace.VMEM),
            cost_estimate=cost,
        )(x, w_kn, b_1n)

    # Large-batch path: tile M with tm=128; weight/bias index_maps return
    # (0, 0) so the tiny tiles are DMA'd once and stay VMEM-resident across
    # M-tiles.  Tail M-tile is handled by Pallas' partial-block masking
    # (garbage rows only ever produce garbage rows that are never stored).
    tm = 128
    return pl.pallas_call(
        _linear_kernel,
        out_shape=jax.ShapeDtypeStruct((M, N), jnp.float32),
        grid=(pl.cdiv(M, tm),),
        in_specs=[
            pl.BlockSpec((tm, K), lambda i: (i, 0)),
            pl.BlockSpec((K, N), lambda i: (0, 0)),
            pl.BlockSpec((1, N), lambda i: (0, 0)),
        ],
        out_specs=pl.BlockSpec((tm, N), lambda i: (i, 0)),
        compiler_params=pltpu.CompilerParams(
            dimension_semantics=("parallel",)
        ),
        cost_estimate=cost,
    )(x, w_kn, b_1n)


# ---------------------------------------------------------------------------
# Binary4NN: forward + parameter setup.
# ---------------------------------------------------------------------------
def binary4nn_forward(params, x):
    """x: (batch, 10) float32 -> (batch, 4) float32."""
    return linear_pallas(x, params["cls_w_kn"], params["cls_b_1n"])


def init_params(key):
    """PyTorch-layout weight (out, in) = (4, 10); all layout fixes done ONCE here."""
    k_w, k_b = jax.random.split(key)
    scale = 0.05
    w_torch = scale * jax.random.normal(k_w, (4, 10), jnp.float32)  # (out, in)
    b = scale * jax.random.normal(k_b, (4,), jnp.float32)
    return {
        "cls_w_kn": jnp.asarray(w_torch.T),      # (10, 4) = (K, N), transposed once
        "cls_b_1n": b.reshape(1, 4),             # (1, N), reshaped once
    }


if __name__ == "__main__":
    key = jax.random.PRNGKey(0)
    k_param, k_x, k_big = jax.random.split(key, 3)

    params = init_params(k_param)
    fwd = jax.jit(binary4nn_forward)

    # Small batch (the module's realistic case) -> gridless path.
    x = jax.random.normal(k_x, (2, 10), jnp.float32)
    logits = fwd(params, x)
    jax.block_until_ready(logits)

    ref = x @ params["cls_w_kn"] + params["cls_b_1n"]
    assert logits.shape == (2, 4), logits.shape
    assert logits.dtype == jnp.float32
    assert jnp.allclose(logits, ref, atol=1e-5, rtol=1e-5)

    # Larger batch (not a multiple of 128) -> tiled path with partial tail tile.
    x_big = jax.random.normal(k_big, (1000, 10), jnp.float32)
    logits_big = fwd(params, x_big)
    jax.block_until_ready(logits_big)
    ref_big = x_big @ params["cls_w_kn"] + params["cls_b_1n"]
    assert logits_big.shape == (1000, 4), logits_big.shape
    assert jnp.allclose(logits_big, ref_big, atol=1e-5, rtol=1e-5)

    print("KERNEL_OK")
</pallas_src>

<mosaic_0001>
module attributes {stable_mosaic.version = 11 : i64} {
  func.func @_linear_kernel(%arg0: memref<2x10xf32, #tpu.memory_space<vmem>>, %arg1: memref<10x4xf32, #tpu.memory_space<vmem>>, %arg2: memref<1x4xf32, #tpu.memory_space<vmem>>, %arg3: memref<2x4xf32, #tpu.memory_space<vmem>>) attributes {dimension_semantics = [], scalar_prefetch = 0 : i64, scratch_operands = 0 : i64, tpu.core_type = #tpu.core_type<tc>} {
    %c0 = arith.constant 0 : index
    %c0_0 = arith.constant 0 : index
    %0 = vector.load %arg0[%c0, %c0_0] : memref<2x10xf32, #tpu.memory_space<vmem>>, vector<2x10xf32>
    %c0_1 = arith.constant 0 : index
    %c0_2 = arith.constant 0 : index
    %1 = vector.load %arg1[%c0_1, %c0_2] : memref<10x4xf32, #tpu.memory_space<vmem>>, vector<10x4xf32>
    %cst = arith.constant dense<0.000000e+00> : vector<2x4xf32>
    %2 = tpu.matmul %0, %1, %cst {dimension_numbers = #tpu.dot_dimension_numbers<[1], [0], [0], [1], [0, 0, 1, 1], [], []>} : vector<2x10xf32>, vector<10x4xf32>, vector<2x4xf32> -> vector<2x4xf32>
    %c0_3 = arith.constant 0 : index
    %c0_4 = arith.constant 0 : index
    %3 = vector.load %arg2[%c0_3, %c0_4] : memref<1x4xf32, #tpu.memory_space<vmem>>, vector<1x4xf32>
    %4 = vector.broadcast %3 : vector<1x4xf32> to vector<2x4xf32>
    %5 = arith.addf %2, %4 : vector<2x4xf32>
    %c0_5 = arith.constant 0 : index
    %c0_6 = arith.constant 0 : index
    %6 = vector.load %arg3[%c0_5, %c0_6] : memref<2x4xf32, #tpu.memory_space<vmem>>, vector<2x4xf32>
    tpu.vector_store %arg3[%c0_5, %c0_6], %5 {strides = array<i32>} : memref<2x4xf32, #tpu.memory_space<vmem>>, vector<2x4xf32>,
    return
  }
}

</mosaic_0001>

<llo_original>
// kernel: binary4nn_forward.1
$region0: #{binary4nn_forward.1}
  #allocation0 [shape = 'u32[]', space=smem, size = 0x4, offset = 0x4, fixed_abs, tag = 'smem constant byte address 0x4 - core index']
  #allocation1 [shape = 'u32[144,128]{1,0:T(1,128)}', space=vmem, size = 0x12000, scoped, tag = 'internal scratch']
  %s0 = inlined_call_operand.vmem [shape: f32[2,10], index: 0, kind: input, shape index: {}]
  %s1 = inlined_call_operand.vmem [shape: f32[10,4], index: 1, kind: input, shape index: {}]
  %s2 = inlined_call_operand.vmem [shape: f32[1,4], index: 2, kind: input, shape index: {}]
  %s3 = inlined_call_operand.hbm [shape: f32[2,4], index: 3, kind: output, shape index: {}]
  %s4 = sld [smem:[#allocation0]]
  $region22: #{binary4nn_forward.1} parent=0
    _
  %s6 = ssub.s32 1, %s4
  %s7 = scalar_select 0, %s6, %s4
  $region1: #{binary4nn_forward.1} parent=0
    #allocation2 [shape = 'u8[1024]{0}', space=vmem, size = 0x400, scoped, tag = 'output window, operand 0, single buffered']
    #allocation3 [shape = 's32[1]{0}', space=sflag, size = 0x4, scoped, tag = 'scoped memory for binary4nn_forward.1']
    %8 = vsyncpa [#allocation3], 0
    // Predicated region
    $region2: #{binary4nn_forward.1} parent=1 // pred_check
      _
    $region3: #{binary4nn_forward.1} parent=1 // pred_check_branch
      %10 = sbr.rel (0) target = $region5
    $region4: #{binary4nn_forward.1} parent=1 // pred_region
      _
    $region5: #{binary4nn_forward.1} parent=1 // pred_fallthru
      _
    // Predicated region
    $region6: #{binary4nn_forward.1} parent=1 // pred_check
      _
    $region7: #{binary4nn_forward.1} parent=1 // pred_check_branch
      %12 = sbr.rel (0) target = $region9
    $region8: #{binary4nn_forward.1} parent=1 // pred_region
      _
    $region9: #{binary4nn_forward.1} parent=1 // pred_fallthru
      _
    // Predicated region
    $region10: #{binary4nn_forward.1} parent=1 // pred_check
      _
    $region11: #{binary4nn_forward.1} parent=1 // pred_check_branch
      %14 = sbr.rel (0) target = $region13
    $region12: #{binary4nn_forward.1} parent=1 // pred_region
      _
    $region13: #{binary4nn_forward.1} parent=1 // pred_fallthru
      _
    %v15 = vld [vmem:[%s0] sm:$0x3]
    %v16 = vld [vmem:[%s1] sm:$0xff]
    %v17 = vld [vmem:[%s1 + $0x8] sm:$0x3]
    %v18 = vld [vmem:[%s2] sm:$0x1]
    %v20 = vlaneseq
    %v21 = vshrl.u32 %v20, 7
    %v22 = vsub.s32 0, %v21
    %v23 = vrot.slane %v18, %v22
    %vm25 = vcmask 80896
    %v27 = vsel %vm25, %v15, 0
    %vm29 = vcmask 1041408
    %v31 = vsel %vm29, %v17, 0
    %33 = vmatprep.subr.mxu0 0.0
    %34 = vmatpush1.msra.mxu0 0.0
    %35 = vmatprep.subr.mxu0 0.0
    %36 = vmatpush1.msra.mxu0 0.0
    %37 = vmatprep.subr.mxu0 0.0
    %38 = vmatpush1.msra.mxu0 0.0
    %39 = vmatprep.subr.mxu0 0.0
    %40 = vmatpush1.msra.mxu0 0.0
    %41 = vmatprep.subr.mxu0 0.0
    %42 = vmatpush1.msra.mxu0 0.0
    %43 = vmatprep.subr.mxu0 0.0
    %44 = vmatpush1.msra.mxu0 0.0
    %45 = vmatprep.subr.mxu0 0.0
    %46 = vmatpush1.msra.mxu0 0.0
    %47 = vmatprep.subr.mxu0 0.0
    %48 = vmatpush1.msra.mxu0 0.0
    %49 = vmatprep.subr.mxu0 0.0
    %50 = vmatpush1.msra.mxu0 0.0
    %51 = vmatprep.subr.mxu0 0.0
    %52 = vmatpush1.msra.mxu0 0.0
    %53 = vmatprep.subr.mxu0 0.0
    %54 = vmatpush1.msra.mxu0 0.0
    %55 = vmatprep.subr.mxu0 0.0
    %56 = vmatpush1.msra.mxu0 0.0
    %57 = vmatprep.subr.mxu0 0.0
    %58 = vmatpush1.msra.mxu0 0.0
    %59 = vmatprep.subr.mxu0 0.0
    %60 = vmatpush1.msra.mxu0 0.0
    %61 = vmatprep.subr.mxu0 0.0
    %62 = vmatpush1.msra.mxu0 %v31
    %63 = vmatprep.subr.mxu0 0.0
    %64 = vmatpush1.msra.mxu0 %v16
    %65 = vmatprep.subr.mxu0 0.0
    %66 = vmatpush2.msra.mxu0 0.0
    %67 = vmatprep.subr.mxu0 0.0
    %68 = vmatpush2.msra.mxu0 0.0
    %69 = vmatprep.subr.mxu0 0.0
    %70 = vmatpush2.msra.mxu0 0.0
    %71 = vmatprep.subr.mxu0 0.0
    %72 = vmatpush2.msra.mxu0 0.0
    %73 = vmatprep.subr.mxu0 0.0
    %74 = vmatpush2.msra.mxu0 0.0
    %75 = vmatprep.subr.mxu0 0.0
    %76 = vmatpush2.msra.mxu0 0.0
    %77 = vmatprep.subr.mxu0 0.0
    %78 = vmatpush2.msra.mxu0 0.0
    %79 = vmatprep.subr.mxu0 0.0
    %80 = vmatpush2.msra.mxu0 0.0
    %81 = vmatprep.subr.mxu0 0.0
    %82 = vmatpush2.msra.mxu0 0.0
    %83 = vmatprep.subr.mxu0 0.0
    %84 = vmatpush2.msra.mxu0 0.0
    %85 = vmatprep.subr.mxu0 0.0
    %86 = vmatpush2.msra.mxu0 0.0
    %87 = vmatprep.subr.mxu0 0.0
    %88 = vmatpush2.msra.mxu0 0.0
    %89 = vmatprep.subr.mxu0 0.0
    %90 = vmatpush2.msra.mxu0 0.0
    %91 = vmatprep.subr.mxu0 0.0
    %92 = vmatpush2.msra.mxu0 0.0
    %93 = vmatprep.subr.mxu0 0.0
    %94 = vmatpush2.msra.mxu0 0.0
    %95 = vmatprep.subr.mxu0 0.0
    %96 = vmatpush2.msra.mxu0 0.0
    %97 = vmatprep.mubr.f32.mxu0 0.0
    %98 = vmatmul.mubr.f32.gmra.mxu0 %v27
    %v99 = vpop.f32.mrf.mxu0
    %v100 = vadd.f32 %v23, %v99
    %v101 = vpop.f32.mrf.mxu0
    %102 = vdwg.mxu0
    %vm103 = vcmask 25600
    %104 = vst.msk [vmem:[#allocation2] sm:$0x3] %vm103, %v100
    // Predicated region
    $region14: #{binary4nn_forward.1} parent=1 // pred_check
      _
    $region15: #{binary4nn_forward.1} parent=1 // pred_check_branch
      %106 = sbr.rel (0) target = $region17
    $region16: #{binary4nn_forward.1} parent=1 // pred_region
      %s108 = ssub.s32 32, 32
      %109 = vsyncadd [#allocation3], %s108
      %s111 = sshll.u32 [#allocation2], 4
      %s112 = int_to_ptr.vmem [resolvable:$true] %s111
      %114 = dma.vmem_to_hbm [thread:$0]  %s112, 32, %s3, [#allocation3]
    $region17: #{binary4nn_forward.1} parent=1 // pred_fallthru
      _
    // Predicated region
    $region18: #{binary4nn_forward.1} parent=1 // pred_check
      _
    $region19: #{binary4nn_forward.1} parent=1 // pred_check_branch
      %116 = sbr.rel (0) target = $region21
    $region20: #{binary4nn_forward.1} parent=1 // pred_region
      %117 = dma.done [#allocation3], 32
    $region21: #{binary4nn_forward.1} parent=1 // pred_fallthru
      _
    %118 = vsyncpa [#allocation3], 1

</llo_original>
